<compile_context>
chip_gen: v5e
topology: v5e:2x2
jax: 0.10.0
libtpu: 0.0.40
codegen_flags: <defaults>
</compile_context>

<pallas_src>
import jax
import jax.numpy as jnp
from jax.experimental import pallas as pl
from jax.experimental.pallas import tpu as pltpu


def _round_up(n, m):
    return ((n + m - 1) // m) * m


def _packed_linear_kernel(x_ref, w_ref, b_ref, o_ref):
    # x_ref: (rows, K)  w_ref: (K, N)  b_ref: (1, N)  o_ref: (rows, N)
    acc = jnp.dot(x_ref[...], w_ref[...], preferred_element_type=jnp.float32)
    o_ref[...] = (acc + b_ref[...]).astype(o_ref.dtype)


def trunk_net_forward(x, weight, bias, *, batch_tile=8192, single_shot_rows=32768):
    """TrunkNet.forward: x (B, P) f32, weight (W, P) (PyTorch layout), bias (W,).

    Returns (B, W, 1, 1) f32.
    """
    B, P = x.shape
    Wd = weight.shape[0]

    # Lane-dense packing factor: g consecutive batch rows per 128-lane output
    # row (row-major flattening of (B, W)).  Falls back to g=1 when W does not
    # divide 128 (output already lane-dense if W >= 128).
    if Wd < 128 and 128 % Wd == 0:
        g = 128 // Wd
    else:
        g = 1

    Bp = _round_up(B, g)
    x_p = x if Bp == B else jnp.pad(x, ((0, Bp - B), (0, 0)))
    rows = Bp // g
    K = g * P
    N = g * Wd

    x_pk = x_p.reshape(rows, K)                                   # contiguous, metadata only
    w_pk = jnp.kron(jnp.eye(g, dtype=weight.dtype), weight.T)     # (K, N), tiny one-off
    b_pk = jnp.tile(bias, g).reshape(1, N)

    cost = pl.CostEstimate(
        flops=2 * rows * K * N,
        transcendentals=0,
        bytes_accessed=4 * (rows * K + K * N + N + rows * N),
    )
    out_shape = jax.ShapeDtypeStruct((rows, N), jnp.float32)

    # Batch-row tile for the gridded path: big DMA per step, >= ~8 steps so
    # v7x's two TensorCores both get several tiles, rows-per-tile a multiple
    # of 8 sublanes.
    tm = min(batch_tile, _round_up(pl.cdiv(Bp, 8), 256))
    tm = max(8 * g, (tm // (8 * g)) * (8 * g))
    use_grid = (Bp > single_shot_rows) and (Bp > tm)

    if not use_grid:
        # Single-shot: all operands live whole in VMEM, no pipeline machinery.
        y_pk = pl.pallas_call(
            _packed_linear_kernel,
            out_shape=out_shape,
            in_specs=[
                pl.BlockSpec(memory_space=pltpu.MemorySpace.VMEM),
                pl.BlockSpec(memory_space=pltpu.MemorySpace.VMEM),
                pl.BlockSpec(memory_space=pltpu.MemorySpace.VMEM),
            ],
            out_specs=pl.BlockSpec(memory_space=pltpu.MemorySpace.VMEM),
            compiler_params=pltpu.CompilerParams(
                vmem_limit_bytes=32 * 1024 * 1024,   # v5e scoped default is only 16 MiB
            ),
            cost_estimate=cost,
        )(x_pk, w_pk, b_pk)
    else:
        tr = tm // g                                  # packed rows per grid step
        y_pk = pl.pallas_call(
            _packed_linear_kernel,
            out_shape=out_shape,
            grid_spec=pltpu.PrefetchScalarGridSpec(
                num_scalar_prefetch=0,
                grid=(pl.cdiv(rows, tr),),
                in_specs=[
                    pl.BlockSpec((tr, K), lambda i: (i, 0)),
                    pl.BlockSpec((K, N), lambda i: (0, 0)),
                    pl.BlockSpec((1, N), lambda i: (0, 0)),
                ],
                out_specs=pl.BlockSpec((tr, N), lambda i: (i, 0)),
            ),
            compiler_params=pltpu.CompilerParams(
                dimension_semantics=("parallel",),    # megacore-shard batch tiles
                vmem_limit_bytes=32 * 1024 * 1024,    # safe on v7x's 64 MiB physical
            ),
            cost_estimate=cost,
        )(x_pk, w_pk, b_pk)

    y = y_pk.reshape(Bp, Wd)[:B]          # metadata reshape + (possible) tail slice
    return y.reshape(B, Wd, 1, 1)         # PyTorch: out[:, :, None, None]


if __name__ == "__main__":
    # TrunkNet(w=32, np=8): fc0 = nn.Linear(8, 32)
    P, Wd = 8, 32

    key = jax.random.PRNGKey(0)
    kx, kw, kb, kx2, kx3 = jax.random.split(key, 5)

    bound = 1.0 / (P ** 0.5)
    weight = jax.random.uniform(kw, (Wd, P), jnp.float32, -bound, bound)
    bias = jax.random.uniform(kb, (Wd,), jnp.float32, -bound, bound)

    def ref(xv):
        return (xv @ weight.T + bias).reshape(xv.shape[0], Wd, 1, 1)

    # 1) tiny batch (B=2, pads to the pack factor) -- single-shot path.
    x = jax.random.normal(kx, (2, P), jnp.float32)
    out = jax.block_until_ready(trunk_net_forward(x, weight, bias))
    assert out.shape == (2, Wd, 1, 1), out.shape
    assert jnp.allclose(out, ref(x), atol=1e-5, rtol=1e-5)

    # 2) moderate batch -- still single-shot (whole problem fits in VMEM).
    x2 = jax.random.normal(kx2, (512, P), jnp.float32)
    out2 = jax.block_until_ready(trunk_net_forward(x2, weight, bias))
    assert out2.shape == (512, Wd, 1, 1), out2.shape
    assert jnp.allclose(out2, ref(x2), atol=1e-5, rtol=1e-5)

    # 3) force the gridded ("parallel" batch-tiled) path at a small size, with a
    #    batch that is neither a multiple of the pack factor nor of the tile,
    #    to exercise padding + remainder-tile masking.
    x3 = jax.random.normal(kx3, (498, P), jnp.float32)
    out3 = jax.block_until_ready(
        trunk_net_forward(x3, weight, bias, batch_tile=128, single_shot_rows=64))
    assert out3.shape == (498, Wd, 1, 1), out3.shape
    assert jnp.allclose(out3, ref(x3), atol=1e-5, rtol=1e-5)

    print("KERNEL_OK")
</pallas_src>

<mosaic_0001>
module attributes {stable_mosaic.version = 11 : i64} {
  func.func @_packed_linear_kernel(%arg0: memref<1x32xf32, #tpu.memory_space<vmem>>, %arg1: memref<32x128xf32, #tpu.memory_space<vmem>>, %arg2: memref<1x128xf32, #tpu.memory_space<vmem>>, %arg3: memref<1x128xf32, #tpu.memory_space<vmem>>) attributes {dimension_semantics = [], scalar_prefetch = 0 : i64, scratch_operands = 0 : i64, tpu.core_type = #tpu.core_type<tc>} {
    %c0 = arith.constant 0 : index
    %c0_0 = arith.constant 0 : index
    %0 = vector.load %arg0[%c0, %c0_0] : memref<1x32xf32, #tpu.memory_space<vmem>>, vector<1x32xf32>
    %c0_1 = arith.constant 0 : index
    %c0_2 = arith.constant 0 : index
    %1 = vector.load %arg1[%c0_1, %c0_2] : memref<32x128xf32, #tpu.memory_space<vmem>>, vector<32x128xf32>
    %cst = arith.constant dense<0.000000e+00> : vector<1x128xf32>
    %2 = tpu.matmul %0, %1, %cst {dimension_numbers = #tpu.dot_dimension_numbers<[1], [0], [0], [1], [0, 0, 1, 1], [], []>} : vector<1x32xf32>, vector<32x128xf32>, vector<1x128xf32> -> vector<1x128xf32>
    %c0_3 = arith.constant 0 : index
    %c0_4 = arith.constant 0 : index
    %3 = vector.load %arg2[%c0_3, %c0_4] : memref<1x128xf32, #tpu.memory_space<vmem>>, vector<1x128xf32>
    %4 = arith.addf %2, %3 : vector<1x128xf32>
    %c0_5 = arith.constant 0 : index
    %c0_6 = arith.constant 0 : index
    %5 = vector.load %arg3[%c0_5, %c0_6] : memref<1x128xf32, #tpu.memory_space<vmem>>, vector<1x128xf32>
    tpu.vector_store %arg3[%c0_5, %c0_6], %4 {strides = array<i32>} : memref<1x128xf32, #tpu.memory_space<vmem>>, vector<1x128xf32>,
    return
  }
}

</mosaic_0001>

<llo_original>
// kernel: tpu_custom_call.1
$region0: #{tpu_custom_call.1}
  #allocation0 [shape = 'u32[]', space=smem, size = 0x4, offset = 0x4, fixed_abs, tag = 'smem constant byte address 0x4 - core index']
  #allocation1 [shape = 'u32[72,128]{1,0:T(1,128)}', space=vmem, size = 0x9000, scoped, tag = 'internal scratch']
  %s0 = inlined_call_operand.hbm [shape: f32[1,32], index: 0, kind: input, shape index: {}]
  %s1 = inlined_call_operand.hbm [shape: f32[32,128], index: 1, kind: input, shape index: {}]
  %s2 = inlined_call_operand.vmem [shape: f32[1,128], index: 2, kind: input, shape index: {}]
  %s3 = inlined_call_operand.hbm [shape: f32[1,128], index: 3, kind: output, shape index: {}]
  %s4 = sld [smem:[#allocation0]]
  $region30: #{tpu_custom_call.1} parent=0
    _
  %s6 = ssub.s32 1, %s4
  %s7 = scalar_select 0, %s6, %s4
  $region1: #{tpu_custom_call.1} parent=0
    #allocation2 [shape = 'u8[512]{0}', space=vmem, size = 0x400, scoped, tag = 'input window, operand 0, single buffered']
    #allocation3 [shape = 's32[1]{0}', space=sflag, size = 0x4, scoped, tag = 'scoped memory for tpu_custom_call.1']
    #allocation4 [shape = 's32[1]{0}', space=sflag, size = 0x4, scoped, tag = 'scoped memory for tpu_custom_call.1']
    #allocation5 [shape = 'u8[16384]{0}', space=vmem, size = 0x4000, scoped, tag = 'input window, operand 1, single buffered']
    #allocation6 [shape = 's32[1]{0}', space=sflag, size = 0x4, scoped, tag = 'scoped memory for tpu_custom_call.1']
    #allocation7 [shape = 'u8[512]{0}', space=vmem, size = 0x400, scoped, tag = 'output window, operand 0, single buffered']
    %8 = vsyncpa [#allocation3], 0
    %9 = vsyncpa [#allocation6], 0
    %10 = vsyncpa [#allocation4], 0
    // Predicated region
    $region2: #{tpu_custom_call.1} parent=1 // pred_check
      _
    $region3: #{tpu_custom_call.1} parent=1 // pred_check_branch
      %12 = sbr.rel (0) target = $region5
    $region4: #{tpu_custom_call.1} parent=1 // pred_region
      %14 = vsyncadd [#allocation3], 0
      %s16 = sshll.u32 %s0, 4
      %s17 = int_to_ptr.hbm [resolvable:$true] %s16
      %s18 = sshll.u32 [#allocation2], 4
      %s19 = int_to_ptr.vmem [resolvable:$true] %s18
      %21 = dma.hbm_to_vmem [thread:$0]  %s17, 16, %s19, [#allocation3]
    $region5: #{tpu_custom_call.1} parent=1 // pred_fallthru
      _
    // Predicated region
    $region6: #{tpu_custom_call.1} parent=1 // pred_check
      _
    $region7: #{tpu_custom_call.1} parent=1 // pred_check_branch
      %23 = sbr.rel (0) target = $region9
    $region8: #{tpu_custom_call.1} parent=1 // pred_region
      %25 = vsyncadd [#allocation6], 0
      %s26 = sshll.u32 %s1, 4
      %s27 = int_to_ptr.hbm [resolvable:$true] %s26
      %s28 = sshll.u32 [#allocation5], 4
      %s29 = int_to_ptr.vmem [resolvable:$true] %s28
      %34 = dma.hbm_to_vmem [thread:$0]  %s27, 512, %s29, [#allocation6], 128, 128, 8
    $region9: #{tpu_custom_call.1} parent=1 // pred_fallthru
      _
    // Predicated region
    $region10: #{tpu_custom_call.1} parent=1 // pred_check
      _
    $region11: #{tpu_custom_call.1} parent=1 // pred_check_branch
      %36 = sbr.rel (0) target = $region13
    $region12: #{tpu_custom_call.1} parent=1 // pred_region
      _
    $region13: #{tpu_custom_call.1} parent=1 // pred_fallthru
      _
    // Predicated region
    $region14: #{tpu_custom_call.1} parent=1 // pred_check
      _
    $region15: #{tpu_custom_call.1} parent=1 // pred_check_branch
      %38 = sbr.rel (0) target = $region17
    $region16: #{tpu_custom_call.1} parent=1 // pred_region
      %40 = dma.done [#allocation3], 16
    $region17: #{tpu_custom_call.1} parent=1 // pred_fallthru
      _
    // Predicated region
    $region18: #{tpu_custom_call.1} parent=1 // pred_check
      _
    $region19: #{tpu_custom_call.1} parent=1 // pred_check_branch
      %42 = sbr.rel (0) target = $region21
    $region20: #{tpu_custom_call.1} parent=1 // pred_region
      %44 = dma.done [#allocation6], 512
    $region21: #{tpu_custom_call.1} parent=1 // pred_fallthru
      _
    %v45 = vld [vmem:[#allocation2] sm:$0x1]
    %v46 = vld [vmem:[#allocation5] sm:$0xff]
    %v47 = vld [vmem:[#allocation5 + $0x8] sm:$0xff]
    %v48 = vld [vmem:[#allocation5 + $0x10] sm:$0xff]
    %v49 = vld [vmem:[#allocation5 + $0x18] sm:$0xff]
    %v50 = vld [vmem:[%s2] sm:$0x1]
    %vm51 = vcmask 261120
    %v53 = vsel %vm51, %v45, 0
    %55 = vmatpush.msra.mxu0 0.0
    %56 = vmatpush.msra.mxu0 0.0
    %57 = vmatpush.msra.mxu0 0.0
    %58 = vmatpush.msra.mxu0 0.0
    %59 = vmatpush.msra.mxu0 0.0
    %60 = vmatpush.msra.mxu0 0.0
    %61 = vmatpush.msra.mxu0 0.0
    %62 = vmatpush.msra.mxu0 0.0
    %63 = vmatpush.msra.mxu0 0.0
    %64 = vmatpush.msra.mxu0 0.0
    %65 = vmatpush.msra.mxu0 0.0
    %66 = vmatpush.msra.mxu0 0.0
    %67 = vmatpush.msra.mxu0 %v49
    %68 = vmatpush.msra.mxu0 %v48
    %69 = vmatpush.msra.mxu0 %v47
    %70 = vmatpush.msra.mxu0 %v46
    %71 = vmatmul.f32.gmra.mxu0 %v53
    %v72 = vpop.f32.mrf.mxu0
    %v73 = vadd.f32 %v50, %v72
    %74 = vdwg.mxu0
    %75 = vst [vmem:[#allocation7] sm:$0x1] %v73
    // Predicated region
    $region22: #{tpu_custom_call.1} parent=1 // pred_check
      _
    $region23: #{tpu_custom_call.1} parent=1 // pred_check_branch
      %77 = sbr.rel (0) target = $region25
    $region24: #{tpu_custom_call.1} parent=1 // pred_region
      %79 = vsyncadd [#allocation4], 0
      %s81 = sshll.u32 [#allocation7], 4
      %s82 = int_to_ptr.vmem [resolvable:$true] %s81
      %s83 = sshll.u32 %s3, 4
      %s84 = int_to_ptr.hbm [resolvable:$true] %s83
      %86 = dma.vmem_to_hbm [thread:$0]  %s82, 16, %s84, [#allocation4]
    $region25: #{tpu_custom_call.1} parent=1 // pred_fallthru
      _
    // Predicated region
    $region26: #{tpu_custom_call.1} parent=1 // pred_check
      _
    $region27: #{tpu_custom_call.1} parent=1 // pred_check_branch
      %88 = sbr.rel (0) target = $region29
    $region28: #{tpu_custom_call.1} parent=1 // pred_region
      %90 = dma.done [#allocation4], 16
    $region29: #{tpu_custom_call.1} parent=1 // pred_fallthru
      _
    %91 = vsyncpa [#allocation3], 1
    %92 = vsyncpa [#allocation6], 1
    %93 = vsyncpa [#allocation4], 1

</llo_original>
